<compile_context>
chip_gen: v7x
topology: tpu7x:2x2x1
jax: 0.10.0
libtpu: 0.0.40
codegen_flags: <defaults>
</compile_context>

<pallas_src>
import functools

import jax
import jax.numpy as jnp
from jax import lax
from jax.experimental import pallas as pl
from jax.experimental.pallas import tpu as pltpu


def _round_up(x: int, m: int) -> int:
    return (x + m - 1) // m * m


def _cosine_loss_kernel(x_ref, y_ref, sx_ref, sy_ref, *,
                        n_rows, m_rows, tiles_x, tiles_y, tr_x, tr_y, eps):
    """One grid step: accumulate sums of L2-normalized rows of both inputs.

    x_ref : (tr_x, D) row tile of y_true (tail rows past N are garbage; masked).
    y_ref : (tr_y, D) row tile of y_pred (tail rows past M are garbage; masked).
    sx_ref, sy_ref : (1, 1, D) f32 per-parallel-slice output accumulators; the
                     same block is revisited across the inner (arbitrary) axis.
    """
    p = pl.program_id(0)
    i = pl.program_id(1)
    t = p * pl.num_programs(1) + i            # global row-tile index

    @pl.when(i == 0)
    def _init():
        sx_ref[...] = jnp.zeros_like(sx_ref)
        sy_ref[...] = jnp.zeros_like(sy_ref)

    @pl.when(t < tiles_x)
    def _acc_x():
        # Global row index of every sublane in this tile (2-D iota for TPU).
        rid = t * tr_x + lax.broadcasted_iota(jnp.int32, (tr_x, 1), 0)
        x = jnp.where(rid < n_rows, x_ref[...].astype(jnp.float32), 0.0)
        # Row-wise L2 normalization via rsqrt (EUP slot). eps guard: masked /
        # zero rows normalize to exactly 0 and contribute nothing to the sum.
        inv = lax.rsqrt(jnp.maximum(jnp.sum(x * x, axis=-1, keepdims=True), eps))
        sx_ref[...] = sx_ref[...] + jnp.sum(x * inv, axis=0, keepdims=True)[None]

    @pl.when(t < tiles_y)
    def _acc_y():
        rid = t * tr_y + lax.broadcasted_iota(jnp.int32, (tr_y, 1), 0)
        y = jnp.where(rid < m_rows, y_ref[...].astype(jnp.float32), 0.0)
        inv = lax.rsqrt(jnp.maximum(jnp.sum(y * y, axis=-1, keepdims=True), eps))
        sy_ref[...] = sy_ref[...] + jnp.sum(y * inv, axis=0, keepdims=True)[None]


def cosine_loss(y_true: jax.Array, y_pred: jax.Array, *,
                row_tile: int | None = None, num_parallel: int = 2) -> jax.Array:
    """y_true: [N, D], y_pred: [M, D] (same D). Returns scalar f32 loss."""
    assert y_true.ndim == 2 and y_pred.ndim == 2
    N, D = y_true.shape
    M, D2 = y_pred.shape
    assert D == D2, "feature dims must match"

    # --- VMEM budget (generation-aware) and row-tile sizing ------------------
    try:
        vmem_phys = int(pltpu.get_tpu_info().vmem_capacity_bytes)
    except Exception:
        vmem_phys = 128 * 1024 * 1024
    # Never request more than half of physical VMEM (v7x has only 64 MiB/TC),
    # capped at 64 MiB on the big-VMEM generations.
    vmem_limit = min(vmem_phys // 2, 64 * 1024 * 1024)

    lane_d = _round_up(D, 128)                     # lanes occupied per row in VMEM
    if row_tile is None:
        bytes_per_row = lane_d * (y_true.dtype.itemsize + y_pred.dtype.itemsize)
        budget = (vmem_limit * 3) // 4             # headroom for outputs/compiler scratch
        tr = (budget // (2 * bytes_per_row)) // 8 * 8   # 2 pipeline buffers per input
        tr = max(8, min(int(tr), 2048))
    else:
        tr = max(8, _round_up(int(row_tile), 8))   # (8,128) rule: 8-divisible rows
    tr = min(tr, _round_up(max(N, M), 8))

    # Per-input tile sizes: if an input fits in one tile, use its exact row
    # count (full-dim block => always legal, no partial block, mask is a no-op).
    tr_x = N if N <= tr else tr
    tr_y = M if M <= tr else tr
    gx = pl.cdiv(N, tr_x)
    gy = pl.cdiv(M, tr_y)
    g_total = max(gx, gy)

    # Leading parallel axis: up to 2 TensorCores (v7x megacore); serial on v5e/v6e.
    P = max(1, min(int(num_parallel), g_total))
    g_inner = pl.cdiv(g_total, P)

    kernel = functools.partial(
        _cosine_loss_kernel,
        n_rows=N, m_rows=M, tiles_x=gx, tiles_y=gy, tr_x=tr_x, tr_y=tr_y,
        eps=1e-16)  # norm floor ~1e-8; guards masked / zero rows

    # Clamp the index maps so the shorter operand's DMA window stops moving
    # once its tiles are exhausted (Pallas skips re-DMA of an unchanged block).
    def x_map(p, i):
        return (jnp.minimum(p * g_inner + i, gx - 1), 0)

    def y_map(p, i):
        return (jnp.minimum(p * g_inner + i, gy - 1), 0)

    cost = pl.CostEstimate(
        flops=3 * (N + M) * D,
        transcendentals=N + M,
        bytes_accessed=(N * D * y_true.dtype.itemsize
                        + M * D * y_pred.dtype.itemsize
                        + 2 * P * D * 4))

    sx, sy = pl.pallas_call(
        kernel,
        out_shape=(jax.ShapeDtypeStruct((P, 1, D), jnp.float32),
                   jax.ShapeDtypeStruct((P, 1, D), jnp.float32)),
        grid=(P, g_inner),
        in_specs=[
            pl.BlockSpec((tr_x, D), x_map),
            pl.BlockSpec((tr_y, D), y_map),
        ],
        # Output block fixed per p across the inner (reduction) axis -> acts as
        # a VMEM-resident accumulator; written back when p advances / at end.
        out_specs=[
            pl.BlockSpec((1, 1, D), lambda p, i: (p, 0, 0)),
            pl.BlockSpec((1, 1, D), lambda p, i: (p, 0, 0)),
        ],
        compiler_params=pltpu.CompilerParams(
            dimension_semantics=("parallel", "arbitrary"),
            vmem_limit_bytes=vmem_limit,
        ),
        cost_estimate=cost,
    )(y_true, y_pred)

    # Tiny finalize in plain JAX: combine per-core partial sums, dot, scale.
    sxv = jnp.sum(sx[:, 0, :], axis=0)
    syv = jnp.sum(sy[:, 0, :], axis=0)
    return (1.0 - jnp.dot(sxv, syv) / jnp.float32(N * M)).astype(jnp.float32)


def _reference(y_true, y_pred):
    xn = y_true / jnp.linalg.norm(y_true, axis=-1, keepdims=True)
    yn = y_pred / jnp.linalg.norm(y_pred, axis=-1, keepdims=True)
    return jnp.mean(1.0 - jnp.mean(xn @ yn.T, axis=-1))


if __name__ == "__main__":
    key = jax.random.PRNGKey(0)
    k1, k2, k3, k4, k5, k6 = jax.random.split(key, 6)

    # 1) Small shapes consistent with the forward (two batches of feature vecs),
    #    single-tile / full-dim-block path, auto tile sizing.
    N, M, D = 12, 7, 40
    y_true = jax.random.normal(k1, (N, D), dtype=jnp.float32)
    y_pred = jax.random.normal(k2, (M, D), dtype=jnp.float32)
    loss = cosine_loss(y_true, y_pred)
    jax.block_until_ready(loss)
    ref = _reference(y_true, y_pred)
    assert jnp.allclose(loss, ref, atol=1e-5, rtol=1e-5), (loss, ref)

    # 2) Multi-tile path with partial last tiles, unequal tile counts, P=2.
    N2, M2, D2 = 100, 90, 200
    y_true2 = jax.random.normal(k3, (N2, D2), dtype=jnp.float32)
    y_pred2 = jax.random.normal(k4, (M2, D2), dtype=jnp.float32)
    loss2 = cosine_loss(y_true2, y_pred2, row_tile=32)
    jax.block_until_ready(loss2)
    ref2 = _reference(y_true2, y_pred2)
    assert jnp.allclose(loss2, ref2, atol=1e-5, rtol=1e-5), (loss2, ref2)

    # 3) Strongly asymmetric row counts: short input's tiles exhaust early
    #    (clamped index_map + pl.when gating), longer input keeps streaming.
    N3, M3, D3 = 40, 200, 64
    y_true3 = jax.random.normal(k5, (N3, D3), dtype=jnp.float32)
    y_pred3 = jax.random.normal(k6, (M3, D3), dtype=jnp.float32)
    loss3 = cosine_loss(y_true3, y_pred3, row_tile=64)
    jax.block_until_ready(loss3)
    ref3 = _reference(y_true3, y_pred3)
    assert jnp.allclose(loss3, ref3, atol=1e-5, rtol=1e-5), (loss3, ref3)

    print("KERNEL_OK")
</pallas_src>

<mosaic_0001>
module attributes {stable_mosaic.version = 11 : i64} {
  func.func @_cosine_loss_kernel(%arg0: i32, %arg1: i32, %arg2: memref<12x40xf32, #tpu.memory_space<vmem>>, %arg3: memref<7x40xf32, #tpu.memory_space<vmem>>, %arg4: memref<1x1x40xf32, #tpu.memory_space<vmem>>, %arg5: memref<1x1x40xf32, #tpu.memory_space<vmem>>) attributes {dimension_semantics = [#tpu.dimension_semantics<parallel>, #tpu.dimension_semantics<arbitrary>], iteration_bounds = array<i64: 1, 1>, scalar_prefetch = 0 : i64, scratch_operands = 0 : i64, tpu.core_type = #tpu.core_type<tc>, window_params = [{transform_indices = @transform_0, window_bounds = array<i64: 12, 40>}, {transform_indices = @transform_1, window_bounds = array<i64: 7, 40>}, {transform_indices = @transform_2, window_bounds = array<i64: 1, 1, 40>}, {transform_indices = @transform_3, window_bounds = array<i64: 1, 1, 40>}]} {
    %c1_i32 = arith.constant 1 : i32
    %0 = arith.muli %arg0, %c1_i32 : i32
    %1 = arith.addi %0, %arg1 : i32
    %c0_i32 = arith.constant 0 : i32
    %2 = arith.cmpi eq, %arg1, %c0_i32 : i32
    %3 = arith.extui %2 : i1 to i32
    %c0_i32_0 = arith.constant 0 : i32
    %4 = arith.cmpi ne, %3, %c0_i32_0 : i32
    scf.if %4 {
      %cst = arith.constant 0.000000e+00 : f32
      %11 = vector.broadcast %cst : f32 to vector<1x1x40xf32>
      %c0 = arith.constant 0 : index
      %c0_5 = arith.constant 0 : index
      %c0_6 = arith.constant 0 : index
      %12 = vector.load %arg4[%c0, %c0_5, %c0_6] : memref<1x1x40xf32, #tpu.memory_space<vmem>>, vector<1x1x40xf32>
      tpu.vector_store %arg4[%c0, %c0_5, %c0_6], %11 {strides = array<i32>} : memref<1x1x40xf32, #tpu.memory_space<vmem>>, vector<1x1x40xf32>,
      %cst_7 = arith.constant 0.000000e+00 : f32
      %13 = vector.broadcast %cst_7 : f32 to vector<1x1x40xf32>
      %c0_8 = arith.constant 0 : index
      %c0_9 = arith.constant 0 : index
      %c0_10 = arith.constant 0 : index
      %14 = vector.load %arg5[%c0_8, %c0_9, %c0_10] : memref<1x1x40xf32, #tpu.memory_space<vmem>>, vector<1x1x40xf32>
      tpu.vector_store %arg5[%c0_8, %c0_9, %c0_10], %13 {strides = array<i32>} : memref<1x1x40xf32, #tpu.memory_space<vmem>>, vector<1x1x40xf32>,
    } else {
    }
    %c1_i32_1 = arith.constant 1 : i32
    %5 = arith.cmpi slt, %1, %c1_i32_1 : i32
    %6 = arith.extui %5 : i1 to i32
    %c0_i32_2 = arith.constant 0 : i32
    %7 = arith.cmpi ne, %6, %c0_i32_2 : i32
    scf.if %7 {
      %c12_i32 = arith.constant 12 : i32
      %11 = arith.muli %1, %c12_i32 : i32
      %12 = tpu.iota {dimensions = array<i32: 0>} : vector<12x1xi32>
      %13 = vector.broadcast %11 : i32 to vector<12x1xi32>
      %14 = arith.addi %13, %12 : vector<12x1xi32>
      %c12_i32_5 = arith.constant 12 : i32
      %15 = vector.broadcast %c12_i32_5 : i32 to vector<12x1xi32>
      %16 = arith.cmpi slt, %14, %15 : vector<12x1xi32>
      %c0 = arith.constant 0 : index
      %c0_6 = arith.constant 0 : index
      %17 = vector.load %arg2[%c0, %c0_6] : memref<12x40xf32, #tpu.memory_space<vmem>>, vector<12x40xf32>
      %cst = arith.constant 0.000000e+00 : f32
      %18 = vector.shape_cast %16 : vector<12x1xi1> to vector<12x1xi1>
      %19 = vector.broadcast %18 : vector<12x1xi1> to vector<12x40xi1>
      %20 = vector.broadcast %cst : f32 to vector<12x40xf32>
      %21 = arith.select %19, %17, %20 : vector<12x40xi1>, vector<12x40xf32>
      %22 = arith.mulf %21, %21 : vector<12x40xf32>
      %cst_7 = arith.constant dense<0.000000e+00> : vector<12xf32>
      %23 = vector.multi_reduction <add>, %22, %cst_7 [1] : vector<12x40xf32> to vector<12xf32>
      %24 = vector.shape_cast %23 : vector<12xf32> to vector<12x1xf32>
      %cst_8 = arith.constant 1.000000e-16 : f32
      %25 = vector.broadcast %cst_8 : f32 to vector<12x1xf32>
      %26 = arith.maximumf %24, %25 : vector<12x1xf32>
      %27 = math.rsqrt %26 : vector<12x1xf32>
      %c0_9 = arith.constant 0 : index
      %c0_10 = arith.constant 0 : index
      %c0_11 = arith.constant 0 : index
      %28 = vector.load %arg4[%c0_9, %c0_10, %c0_11] : memref<1x1x40xf32, #tpu.memory_space<vmem>>, vector<1x1x40xf32>
      %29 = vector.broadcast %27 : vector<12x1xf32> to vector<12x40xf32>
      %30 = arith.mulf %21, %29 : vector<12x40xf32>
      %cst_12 = arith.constant dense<0.000000e+00> : vector<40xf32>
      %31 = vector.multi_reduction <add>, %30, %cst_12 [0] : vector<12x40xf32> to vector<40xf32>
      %32 = vector.shape_cast %31 : vector<40xf32> to vector<1x40xf32>
      %33 = vector.shape_cast %32 : vector<1x40xf32> to vector<1x1x40xf32>
      %34 = arith.addf %28, %33 : vector<1x1x40xf32>
      %c0_13 = arith.constant 0 : index
      %c0_14 = arith.constant 0 : index
      %c0_15 = arith.constant 0 : index
      %35 = vector.load %arg4[%c0_13, %c0_14, %c0_15] : memref<1x1x40xf32, #tpu.memory_space<vmem>>, vector<1x1x40xf32>
      tpu.vector_store %arg4[%c0_13, %c0_14, %c0_15], %34 {strides = array<i32>} : memref<1x1x40xf32, #tpu.memory_space<vmem>>, vector<1x1x40xf32>,
    } else {
    }
    %c1_i32_3 = arith.constant 1 : i32
    %8 = arith.cmpi slt, %1, %c1_i32_3 : i32
    %9 = arith.extui %8 : i1 to i32
    %c0_i32_4 = arith.constant 0 : i32
    %10 = arith.cmpi ne, %9, %c0_i32_4 : i32
    scf.if %10 {
      %c7_i32 = arith.constant 7 : i32
      %11 = arith.muli %1, %c7_i32 : i32
      %12 = tpu.iota {dimensions = array<i32: 0>} : vector<7x1xi32>
      %13 = vector.broadcast %11 : i32 to vector<7x1xi32>
      %14 = arith.addi %13, %12 : vector<7x1xi32>
      %c7_i32_5 = arith.constant 7 : i32
      %15 = vector.broadcast %c7_i32_5 : i32 to vector<7x1xi32>
      %16 = arith.cmpi slt, %14, %15 : vector<7x1xi32>
      %c0 = arith.constant 0 : index
      %c0_6 = arith.constant 0 : index
      %17 = vector.load %arg3[%c0, %c0_6] : memref<7x40xf32, #tpu.memory_space<vmem>>, vector<7x40xf32>
      %cst = arith.constant 0.000000e+00 : f32
      %18 = vector.shape_cast %16 : vector<7x1xi1> to vector<7x1xi1>
      %19 = vector.broadcast %18 : vector<7x1xi1> to vector<7x40xi1>
      %20 = vector.broadcast %cst : f32 to vector<7x40xf32>
      %21 = arith.select %19, %17, %20 : vector<7x40xi1>, vector<7x40xf32>
      %22 = arith.mulf %21, %21 : vector<7x40xf32>
      %cst_7 = arith.constant dense<0.000000e+00> : vector<7xf32>
      %23 = vector.multi_reduction <add>, %22, %cst_7 [1] : vector<7x40xf32> to vector<7xf32>
      %24 = vector.shape_cast %23 : vector<7xf32> to vector<7x1xf32>
      %cst_8 = arith.constant 1.000000e-16 : f32
      %25 = vector.broadcast %cst_8 : f32 to vector<7x1xf32>
      %26 = arith.maximumf %24, %25 : vector<7x1xf32>
      %27 = math.rsqrt %26 : vector<7x1xf32>
      %c0_9 = arith.constant 0 : index
      %c0_10 = arith.constant 0 : index
      %c0_11 = arith.constant 0 : index
      %28 = vector.load %arg5[%c0_9, %c0_10, %c0_11] : memref<1x1x40xf32, #tpu.memory_space<vmem>>, vector<1x1x40xf32>
      %29 = vector.broadcast %27 : vector<7x1xf32> to vector<7x40xf32>
      %30 = arith.mulf %21, %29 : vector<7x40xf32>
      %cst_12 = arith.constant dense<0.000000e+00> : vector<40xf32>
      %31 = vector.multi_reduction <add>, %30, %cst_12 [0] : vector<7x40xf32> to vector<40xf32>
      %32 = vector.shape_cast %31 : vector<40xf32> to vector<1x40xf32>
      %33 = vector.shape_cast %32 : vector<1x40xf32> to vector<1x1x40xf32>
      %34 = arith.addf %28, %33 : vector<1x1x40xf32>
      %c0_13 = arith.constant 0 : index
      %c0_14 = arith.constant 0 : index
      %c0_15 = arith.constant 0 : index
      %35 = vector.load %arg5[%c0_13, %c0_14, %c0_15] : memref<1x1x40xf32, #tpu.memory_space<vmem>>, vector<1x1x40xf32>
      tpu.vector_store %arg5[%c0_13, %c0_14, %c0_15], %34 {strides = array<i32>} : memref<1x1x40xf32, #tpu.memory_space<vmem>>, vector<1x1x40xf32>,
    } else {
    }
    return
  }
  func.func @transform_0(%arg0: i32, %arg1: i32) -> (i32, i32) {
    %c1_i32 = arith.constant 1 : i32
    %0 = arith.muli %arg0, %c1_i32 : i32
    %1 = arith.addi %0, %arg1 : i32
    %c0_i32 = arith.constant 0 : i32
    %2 = arith.minsi %1, %c0_i32 : i32
    %c0_i32_0 = arith.constant 0 : i32
    %c0_i32_1 = arith.constant 0 : i32
    return %2, %c0_i32_0 : i32, i32
  }
  func.func @transform_1(%arg0: i32, %arg1: i32) -> (i32, i32) {
    %c1_i32 = arith.constant 1 : i32
    %0 = arith.muli %arg0, %c1_i32 : i32
    %1 = arith.addi %0, %arg1 : i32
    %c0_i32 = arith.constant 0 : i32
    %2 = arith.minsi %1, %c0_i32 : i32
    %c0_i32_0 = arith.constant 0 : i32
    %c0_i32_1 = arith.constant 0 : i32
    return %2, %c0_i32_0 : i32, i32
  }
  func.func @transform_2(%arg0: i32, %arg1: i32) -> (i32, i32, i32) {
    %c0_i32 = arith.constant 0 : i32
    %c0_i32_0 = arith.constant 0 : i32
    %c0_i32_1 = arith.constant 0 : i32
    return %arg0, %c0_i32, %c0_i32_0 : i32, i32, i32
  }
  func.func @transform_3(%arg0: i32, %arg1: i32) -> (i32, i32, i32) {
    %c0_i32 = arith.constant 0 : i32
    %c0_i32_0 = arith.constant 0 : i32
    %c0_i32_1 = arith.constant 0 : i32
    return %arg0, %c0_i32, %c0_i32_0 : i32, i32, i32
  }
}

</mosaic_0001>

<llo_original>
// kernel: tpu_custom_call.1
$region0: #{tpu_custom_call.1}
  #allocation0 [shape = 'u32[]', space=smem, size = 0x4, offset = 0x4, fixed_abs, tag = 'smem constant byte address 0x4 - core index']
  #allocation1 [shape = 'u32[144,128]{1,0:T(1,128)}', space=vmem, size = 0x12000, scoped, tag = 'internal scratch']
  %s0 = inlined_call_operand.hbm [shape: f32[12,40], index: 0, kind: input, shape index: {}]
  %s1 = inlined_call_operand.hbm [shape: f32[7,40], index: 1, kind: input, shape index: {}]
  %s2 = inlined_call_operand.hbm [shape: f32[1,1,40], index: 2, kind: output, shape index: {0}]
  %s3 = inlined_call_operand.hbm [shape: f32[1,1,40], index: 3, kind: output, shape index: {1}]
  %4 = xla_tuple %s2, %s3
  %s5 = sld [smem:[#allocation0]]
  $region42: #{tpu_custom_call.1} parent=0
    _
  %s7 = ssub.s32 1, %s5
  %s8 = scalar_select 0, %s7, %s5
  $region1: #{tpu_custom_call.1} parent=0
    #allocation2 [shape = 'u8[8192]{0}', space=vmem, size = 0x2000, scoped, tag = 'input window, operand 0, single buffered']
    #allocation3 [shape = 's32[1]{0}', space=sflag, size = 0x4, scoped, tag = 'scoped memory for tpu_custom_call.1']
    #allocation4 [shape = 's32[1]{0}', space=sflag, size = 0x4, scoped, tag = 'scoped memory for tpu_custom_call.1']
    #allocation5 [shape = 'u8[4096]{0}', space=vmem, size = 0x1000, scoped, tag = 'input window, operand 1, single buffered']
    #allocation6 [shape = 's32[1]{0}', space=sflag, size = 0x4, scoped, tag = 'scoped memory for tpu_custom_call.1']
    #allocation7 [shape = 'u8[512]{0}', space=vmem, size = 0x400, scoped, tag = 'output window, operand 0, single buffered']
    #allocation8 [shape = 'u8[512]{0}', space=vmem, size = 0x400, scoped, tag = 'output window, operand 1, single buffered']
    #allocation9 [shape = 's32[1]{0}', space=sflag, size = 0x4, scoped, tag = 'scoped memory for tpu_custom_call.1']
    %9 = vsyncpa [#allocation3], 0
    %10 = vsyncpa [#allocation6], 0
    %11 = vsyncpa [#allocation4], 0
    %12 = vsyncpa [#allocation9], 0
    // Predicated region
    $region2: #{tpu_custom_call.1} parent=1 // pred_check
      _
    $region3: #{tpu_custom_call.1} parent=1 // pred_check_branch
      %14 = sbr.rel (0) target = $region5
    $region4: #{tpu_custom_call.1} parent=1 // pred_region
      %s15 = sadd.s32 0, 0
      %p16 = scmp.lt.s32.totalorder %s15, 0
      %s17 = scalar_select %p16, %s15, 0
      %s18 = smul.u32 2, %s17
      %s20 = ssub.s32 256, 256
      %21 = vsyncadd [#allocation3], %s20
      %s22 = smul.addr %s18, 128
      %s23 = scalar_lea.hbm %s0, %s22
      %s24 = sshll.u32 [#allocation2], 4
      %s25 = int_to_ptr.vmem [resolvable:$true] %s24
      %30 = dma.hbm_to_vmem [thread:$0]  %s23, 256, %s25, [#allocation3], 128, 128, 8
    $region5: #{tpu_custom_call.1} parent=1 // pred_fallthru
      _
    // Predicated region
    $region6: #{tpu_custom_call.1} parent=1 // pred_check
      _
    $region7: #{tpu_custom_call.1} parent=1 // pred_check_branch
      %32 = sbr.rel (0) target = $region9
    $region8: #{tpu_custom_call.1} parent=1 // pred_region
      %s33 = sadd.s32 0, 0
      %p34 = scmp.lt.s32.totalorder %s33, 0
      %s35 = scalar_select %p34, %s33, 0
      %s37 = ssub.s32 128, 128
      %38 = vsyncadd [#allocation6], %s37
      %s39 = smul.addr %s35, 128
      %s40 = scalar_lea.hbm %s1, %s39
      %s42 = sshll.u32 [#allocation5], 4
      %s43 = int_to_ptr.vmem [resolvable:$true] %s42
      %45 = dma.hbm_to_vmem [thread:$0]  %s40, 128, %s43, [#allocation6]
    $region9: #{tpu_custom_call.1} parent=1 // pred_fallthru
      _
    // Predicated region
    $region10: #{tpu_custom_call.1} parent=1 // pred_check
      _
    $region11: #{tpu_custom_call.1} parent=1 // pred_check_branch
      %47 = sbr.rel (0) target = $region13
    $region12: #{tpu_custom_call.1} parent=1 // pred_region
      %48 = dma.done [#allocation3], 256
    $region13: #{tpu_custom_call.1} parent=1 // pred_fallthru
      _
    // Predicated region
    $region14: #{tpu_custom_call.1} parent=1 // pred_check
      _
    $region15: #{tpu_custom_call.1} parent=1 // pred_check_branch
      %50 = sbr.rel (0) target = $region17
    $region16: #{tpu_custom_call.1} parent=1 // pred_region
      %51 = dma.done [#allocation6], 128
    $region17: #{tpu_custom_call.1} parent=1 // pred_fallthru
      _
    %s52 = sadd.s32 0, 0
    %p53 = scmp.lt.s32.totalorder %s52, 0
    %s54 = scalar_select %p53, %s52, 0
    %s55 = smul.u32 2, %s54
    %s56 = sadd.s32 0, 0
    %p57 = scmp.lt.s32.totalorder %s56, 0
    %s58 = scalar_select %p57, %s56, 0
    %s59 = sadd.s32 0, 0
    %p60 = scmp.eq.s32.totalorder 0, 0
    // Predicated region
    $region18: #{tpu_custom_call.1} parent=1 // pred_check
      %p61 = pneg %p60
    $region19: #{tpu_custom_call.1} parent=1 // pred_check_branch
      %63 = sbr.rel (%p61) target = $region21
    $region20: #{tpu_custom_call.1} parent=1 // pred_region
      %vm64 = vcmask 319488
      %65 = vst.msk [vmem:[#allocation7] sm:$0x1] %vm64, 0.0
      %66 = vst.msk [vmem:[#allocation8] sm:$0x1] %vm64, 0.0
    $region21: #{tpu_custom_call.1} parent=1 // pred_fallthru
      _
    %p67 = scmp.lt.s32.totalorder %s59, 1
    // Predicated region
    $region22: #{tpu_custom_call.1} parent=1 // pred_check
      %p68 = pneg %p67
    $region23: #{tpu_custom_call.1} parent=1 // pred_check_branch
      %70 = sbr.rel (%p68) target = $region25
    $region24: #{tpu_custom_call.1} parent=1 // pred_region
      %s71 = smul.u32 %s59, 12
      %v72 = vlaneseq
      %v73 = vshrl.u32 %v72, 7
      %v74 = vadd.s32 %v73, 8
      %v75 = vstv %s71
      %v76 = vadd.s32 %v75, %v73
      %v77 = vadd.s32 %v75, %v74
      %vm78 = vcmp.lt.s32.totalorder %v76, 12
      %vm79 = vcmp.lt.s32.totalorder %v77, 12
      %v80 = vld [vmem:[#allocation2] sm:$0xff]
      %v81 = vld [vmem:[#allocation2 + $0x8] sm:$0xf]
      %v82 = vsel %vm78, 1, 0
      %v83 = vsel %vm79, 1, 0
      %vm84 = vcmp.eq.s32.totalorder %v82, 1
      %vm85 = vcmp.eq.s32.totalorder %v83, 1
      %v86 = vsel %vm84, %v80, 0.0
      %v87 = vsel %vm85, %v81, 0.0
      %v88 = vmul.f32 %v86, %v86
      %v89 = vmul.f32 %v87, %v87
      %vm90 = vcmask 326656
      %v91 = vsel %vm90, %v88, 0.0
      %92 = vadd.xlane.f32.xlu0 %v91
      %v93 = vpop.xlane.xlu0 %92
      %vm94 = vcmask 322560
      %v95 = vsel %vm94, %v89, 0.0
      %96 = vadd.xlane.f32.xlu0 %v95
      %v97 = vpop.xlane.xlu0 %96
      %v98 = vmax.f32 %v93, 1e-16
      %v99 = vmax.f32 %v97, 1e-16
      %v100 = vrsqrt.pop %v98
      %v101 = vrsqrt.pop %v99
      %v102 = vld [vmem:[#allocation7] sm:$0x1]
      %v103 = vmul.f32 %v86, %v100
      %v104 = vmul.f32 %v87, %v101
      %v105 = vsel %vm90, %v103, 0.0
      %v106 = vsel %vm94, %v104, 0.0
      %v107 = vadd.f32 %v105, %v106
      %v108 = vrot.slane %v107, 4
      %v109 = vadd.f32 %v107, %v108
      %v110 = vrot.slane %v109, 2
      %v111 = vadd.f32 %v109, %v110
      %v112 = vrot.slane %v111, 1
      %v113 = vadd.f32 %v111, %v112
      %v114 = vadd.f32 %v102, %v113
      %vm115 = vcmask 319488
      %116 = vst.msk [vmem:[#allocation7] sm:$0x1] %vm115, %v114
      %s117 = smul.u32 %s59, 7
      %v118 = vstv %s117
      %v119 = vadd.s32 %v118, %v73
      %vm120 = vcmp.lt.s32.totalorder %v119, 7
      %v121 = vld [vmem:[#allocation5] sm:$0x7f]
      %v122 = vsel %vm120, 1, 0
      %vm123 = vcmp.eq.s32.totalorder %v122, 1
      %v124 = vsel %vm123, %v121, 0.0
      %v125 = vmul.f32 %v124, %v124
      %vm126 = vcmask 325632
      %v127 = vsel %vm126, %v125, 0.0
      %128 = vadd.xlane.f32.xlu0 %v127
      %v129 = vpop.xlane.xlu0 %128
      %v130 = vmax.f32 %v129, 1e-16
      %v131 = vrsqrt.pop %v130
      %v132 = vld [vmem:[#allocation8] sm:$0x1]
      %v133 = vmul.f32 %v124, %v131
      %v134 = vsel %vm126, %v133, 0.0
      %v135 = vrot.slane %v134, 4
      %v136 = vadd.f32 %v134, %v135
      %v137 = vrot.slane %v136, 2
      %v138 = vadd.f32 %v136, %v137
      %v139 = vrot.slane %v138, 1
      %v140 = vadd.f32 %v138, %v139
      %v141 = vadd.f32 %v132, %v140
      %142 = vst.msk [vmem:[#allocation8] sm:$0x1] %vm115, %v141
    $region25: #{tpu_custom_call.1} parent=1 // pred_fallthru
      _
    // Predicated region
    $region26: #{tpu_custom_call.1} parent=1 // pred_check
      _
    $region27: #{tpu_custom_call.1} parent=1 // pred_check_branch
      %144 = sbr.rel (0) target = $region29
    $region28: #{tpu_custom_call.1} parent=1 // pred_region
      %s146 = ssub.s32 16, 16
      %147 = vsyncadd [#allocation4], %s146
      %s149 = sshll.u32 [#allocation7], 4
      %s150 = int_to_ptr.vmem [resolvable:$true] %s149
      %152 = dma.vmem_to_hbm [thread:$0]  %s150, 16, %s2, [#allocation4]
    $region29: #{tpu_custom_call.1} parent=1 // pred_fallthru
      _
    // Predicated region
    $region30: #{tpu_custom_call.1} parent=1 // pred_check
      _
    $region31: #{tpu_custom_call.1} parent=1 // pred_check_branch
      %154 = sbr.rel (0) target = $region33
    $region32: #{tpu_custom_call.1} parent=1 // pred_region
      %s156 = ssub.s32 16, 16
      %157 = vsyncadd [#allocation9], %s156
      %s159 = sshll.u32 [#allocation8], 4
      %s160 = int_to_ptr.vmem [resolvable:$true] %s159
      %162 = dma.vmem_to_hbm [thread:$0]  %s160, 16, %s3, [#allocation9]
    $region33: #{tpu_custom_call.1} parent=1 // pred_fallthru
      _
    // Predicated region
    $region34: #{tpu_custom_call.1} parent=1 // pred_check
      _
    $region35: #{tpu_custom_call.1} parent=1 // pred_check_branch
      %164 = sbr.rel (0) target = $region37
    $region36: #{tpu_custom_call.1} parent=1 // pred_region
      %165 = dma.done [#allocation4], 16
    $region37: #{tpu_custom_call.1} parent=1 // pred_fallthru
      _
    // Predicated region
    $region38: #{tpu_custom_call.1} parent=1 // pred_check
      _
    $region39: #{tpu_custom_call.1} parent=1 // pred_check_branch
      %167 = sbr.rel (0) target = $region41
    $region40: #{tpu_custom_call.1} parent=1 // pred_region
      %168 = dma.done [#allocation9], 16
    $region41: #{tpu_custom_call.1} parent=1 // pred_fallthru
      _
    %169 = vsyncpa [#allocation3], 1
    %170 = vsyncpa [#allocation6], 1
    %171 = vsyncpa [#allocation4], 1
    %172 = vsyncpa [#allocation9], 1

</llo_original>
